<compile_context>
chip_gen: v7x
topology: tpu7x:2x2x1
jax: 0.10.0
libtpu: 0.0.40
codegen_flags: <defaults>
</compile_context>

<pallas_src>
import functools

import jax
import jax.numpy as jnp
from jax.experimental import pallas as pl
from jax.experimental.pallas import tpu as pltpu

_EPS = 1e-12            # matches torch.nn.functional.normalize default eps
_EPS_SQ = _EPS * _EPS   # rsqrt(max(sumsq, eps^2)) == 1 / max(||x||_2, eps)

_DEFAULT_TILE = 256     # multiple of 128: fills v6e/v7x 256x256 MXU, 2x128 lanes on v5e
_SMALL_SEQ = 128        # below this, fold BH into the block instead of the grid
_MAX_BATCH_BLOCK = 16   # max (b,h) pairs folded into one small-path block


def _normalize_rows(x_f32, mxu_dtype):
    """F.normalize(x, dim=-1) == x * rsqrt(max(sum(x^2), eps^2)); cast for MXU."""
    sumsq = jnp.sum(x_f32 * x_f32, axis=-1, keepdims=True)
    scale = jax.lax.rsqrt(jnp.maximum(sumsq, _EPS_SQ))
    return (x_f32 * scale).astype(mxu_dtype)


def _tiled_kernel(q_ref, k_ref, o_ref, *, mxu_dtype):
    # q_ref: (TQ, Dk), k_ref: (TK, Dk), o_ref: (TQ, TK); BH dim squeezed.
    qn = _normalize_rows(q_ref[...].astype(jnp.float32), mxu_dtype)
    kn = _normalize_rows(k_ref[...].astype(jnp.float32), mxu_dtype)
    # Contract last dims of both operands: no explicit kn.T / XLU transpose.
    sim = jax.lax.dot_general(
        qn, kn, (((1,), (1,)), ((), ())), preferred_element_type=jnp.float32
    )
    o_ref[...] = sim.astype(o_ref.dtype)


def _batched_kernel(q_ref, k_ref, o_ref, *, mxu_dtype):
    # q_ref: (G, Nq, Dk), k_ref: (G, Nk, Dk), o_ref: (G, Nq, Nk)
    qn = _normalize_rows(q_ref[...].astype(jnp.float32), mxu_dtype)
    kn = _normalize_rows(k_ref[...].astype(jnp.float32), mxu_dtype)
    sim = jax.lax.dot_general(
        qn, kn, (((2,), (2,)), ((0,), (0,))), preferred_element_type=jnp.float32
    )
    o_ref[...] = sim.astype(o_ref.dtype)


def cosine_query_key_similarity(queries: jax.Array, keys: jax.Array) -> jax.Array:
    """queries: (..., Nq, Dk), keys: (..., Nk, Dk) -> (..., Nq, Nk)."""
    *q_batch, Nq, Dk = queries.shape
    *k_batch, Nk, Dk2 = keys.shape
    assert Dk == Dk2 and tuple(q_batch) == tuple(k_batch), "query/key shape mismatch"

    out_dtype = jnp.promote_types(queries.dtype, keys.dtype)
    # bf16 MXU operands (f32 accumulation) when inputs are bf16; f32 otherwise.
    mxu_dtype = jnp.bfloat16 if out_dtype == jnp.bfloat16 else jnp.float32

    BH = 1
    for d in q_batch:
        BH *= d
    q3 = queries.reshape(BH, Nq, Dk)
    k3 = keys.reshape(BH, Nk, Dk)

    if Nq <= _SMALL_SEQ and Nk <= _SMALL_SEQ:
        # Small sequences: fold several (b, h) pairs into one block so the
        # per-grid-step overhead and masked stores don't dominate.
        G = min(BH, _MAX_BATCH_BLOCK)
        grid = (pl.cdiv(BH, G),)
        kernel = functools.partial(_batched_kernel, mxu_dtype=mxu_dtype)
        in_specs = [
            pl.BlockSpec((G, Nq, Dk), lambda g: (g, 0, 0)),
            pl.BlockSpec((G, Nk, Dk), lambda g: (g, 0, 0)),
        ]
        out_spec = pl.BlockSpec((G, Nq, Nk), lambda g: (g, 0, 0))
        dims = ("parallel",)
    else:
        # General path: tile Nq and Nk; Dk stays fully resident (no reduction
        # grid axis). Per-step VMEM is a few hundred KiB regardless of N.
        TQ = min(_DEFAULT_TILE, Nq)
        TK = min(_DEFAULT_TILE, Nk)
        grid = (BH, pl.cdiv(Nq, TQ), pl.cdiv(Nk, TK))
        kernel = functools.partial(_tiled_kernel, mxu_dtype=mxu_dtype)
        in_specs = [
            pl.BlockSpec((pl.Squeezed(), TQ, Dk), lambda b, i, j: (b, i, 0)),
            pl.BlockSpec((pl.Squeezed(), TK, Dk), lambda b, i, j: (b, j, 0)),
        ]
        out_spec = pl.BlockSpec((pl.Squeezed(), TQ, TK), lambda b, i, j: (b, i, j))
        dims = ("parallel", "parallel", "parallel")

    out3 = pl.pallas_call(
        kernel,
        out_shape=jax.ShapeDtypeStruct((BH, Nq, Nk), out_dtype),
        grid_spec=pltpu.PrefetchScalarGridSpec(
            num_scalar_prefetch=0,
            grid=grid,
            in_specs=in_specs,
            out_specs=out_spec,
        ),
        compiler_params=pltpu.CompilerParams(dimension_semantics=dims),
    )(q3, k3)

    return out3.reshape(*q_batch, Nq, Nk)


def _reference(queries, keys):
    q = queries.astype(jnp.float32)
    k = keys.astype(jnp.float32)
    qn = q / jnp.maximum(jnp.linalg.norm(q, axis=-1, keepdims=True), _EPS)
    kn = k / jnp.maximum(jnp.linalg.norm(k, axis=-1, keepdims=True), _EPS)
    return jnp.einsum("...qd,...kd->...qk", qn, kn)


if __name__ == "__main__":
    key = jax.random.PRNGKey(0)
    k1, k2, k3, k4, k5, k6 = jax.random.split(key, 6)

    # --- Small-sequence (batched-block) path, f32 ---
    B, H, Nq, Nk, Dk = 2, 4, 8, 8, 32
    q = jax.random.normal(k1, (B, H, Nq, Dk), dtype=jnp.float32)
    k = jax.random.normal(k2, (B, H, Nk, Dk), dtype=jnp.float32)
    out = jax.block_until_ready(cosine_query_key_similarity(q, k))
    ref = _reference(q, k)
    assert out.shape == (B, H, Nq, Nk)
    assert jnp.allclose(out, ref, atol=1e-5, rtol=1e-5)

    # --- Tiled path (incl. a partial Nk tile), f32 ---
    B2, H2, Nq2, Nk2, Dk2 = 1, 2, 256, 384, 64
    q2 = jax.random.normal(k3, (B2, H2, Nq2, Dk2), dtype=jnp.float32)
    kk2 = jax.random.normal(k4, (B2, H2, Nk2, Dk2), dtype=jnp.float32)
    out2 = jax.block_until_ready(cosine_query_key_similarity(q2, kk2))
    ref2 = _reference(q2, kk2)
    assert out2.shape == (B2, H2, Nq2, Nk2)
    assert jnp.allclose(out2, ref2, atol=1e-3, rtol=1e-3)

    # --- Small-sequence path, bf16 (bf16 MXU operands, f32 accumulation) ---
    B3, H3, Nq3, Nk3, Dk3 = 2, 2, 16, 16, 32
    q3 = jax.random.normal(k5, (B3, H3, Nq3, Dk3), dtype=jnp.bfloat16)
    kk3 = jax.random.normal(k6, (B3, H3, Nk3, Dk3), dtype=jnp.bfloat16)
    out3 = jax.block_until_ready(cosine_query_key_similarity(q3, kk3))
    ref3 = _reference(q3, kk3)
    assert out3.dtype == jnp.bfloat16
    assert jnp.allclose(out3.astype(jnp.float32), ref3, atol=2e-2, rtol=2e-2)

    print("KERNEL_OK")
</pallas_src>

<mosaic_0001>
module attributes {stable_mosaic.version = 11 : i64} {
  func.func @_batched_kernel(%arg0: i32, %arg1: memref<8x8x32xf32, #tpu.memory_space<vmem>>, %arg2: memref<8x8x32xf32, #tpu.memory_space<vmem>>, %arg3: memref<8x8x8xf32, #tpu.memory_space<vmem>>) attributes {dimension_semantics = [#tpu.dimension_semantics<parallel>], iteration_bounds = array<i64: 1>, scalar_prefetch = 0 : i64, scratch_operands = 0 : i64, tpu.core_type = #tpu.core_type<tc>, window_params = [{transform_indices = @transform_0, window_bounds = array<i64: 8, 8, 32>}, {transform_indices = @transform_1, window_bounds = array<i64: 8, 8, 32>}, {transform_indices = @transform_2, window_bounds = array<i64: 8, 8, 8>}]} {
    %c0 = arith.constant 0 : index
    %c0_0 = arith.constant 0 : index
    %c0_1 = arith.constant 0 : index
    %0 = vector.load %arg1[%c0, %c0_0, %c0_1] : memref<8x8x32xf32, #tpu.memory_space<vmem>>, vector<8x8x32xf32>
    %1 = arith.mulf %0, %0 : vector<8x8x32xf32>
    %cst = arith.constant dense<0.000000e+00> : vector<8x8xf32>
    %2 = vector.multi_reduction <add>, %1, %cst [2] : vector<8x8x32xf32> to vector<8x8xf32>
    %3 = vector.shape_cast %2 : vector<8x8xf32> to vector<8x8x1xf32>
    %cst_2 = arith.constant 1.000000e-24 : f32
    %4 = vector.broadcast %cst_2 : f32 to vector<8x8x1xf32>
    %5 = arith.maximumf %3, %4 : vector<8x8x1xf32>
    %6 = math.rsqrt %5 : vector<8x8x1xf32>
    %7 = vector.broadcast %6 : vector<8x8x1xf32> to vector<8x8x32xf32>
    %8 = arith.mulf %0, %7 : vector<8x8x32xf32>
    %c0_3 = arith.constant 0 : index
    %c0_4 = arith.constant 0 : index
    %c0_5 = arith.constant 0 : index
    %9 = vector.load %arg2[%c0_3, %c0_4, %c0_5] : memref<8x8x32xf32, #tpu.memory_space<vmem>>, vector<8x8x32xf32>
    %10 = arith.mulf %9, %9 : vector<8x8x32xf32>
    %cst_6 = arith.constant dense<0.000000e+00> : vector<8x8xf32>
    %11 = vector.multi_reduction <add>, %10, %cst_6 [2] : vector<8x8x32xf32> to vector<8x8xf32>
    %12 = vector.shape_cast %11 : vector<8x8xf32> to vector<8x8x1xf32>
    %cst_7 = arith.constant 1.000000e-24 : f32
    %13 = vector.broadcast %cst_7 : f32 to vector<8x8x1xf32>
    %14 = arith.maximumf %12, %13 : vector<8x8x1xf32>
    %15 = math.rsqrt %14 : vector<8x8x1xf32>
    %16 = vector.broadcast %15 : vector<8x8x1xf32> to vector<8x8x32xf32>
    %17 = arith.mulf %9, %16 : vector<8x8x32xf32>
    %cst_8 = arith.constant dense<0.000000e+00> : vector<8x8x8xf32>
    %18 = tpu.matmul %8, %17, %cst_8 {dimension_numbers = #tpu.dot_dimension_numbers<[2], [2], [1], [1], [0, 0, 0, 1, 1, 1], [0], [0]>} : vector<8x8x32xf32>, vector<8x8x32xf32>, vector<8x8x8xf32> -> vector<8x8x8xf32>
    %c0_9 = arith.constant 0 : index
    %c0_10 = arith.constant 0 : index
    %c0_11 = arith.constant 0 : index
    %19 = vector.load %arg3[%c0_9, %c0_10, %c0_11] : memref<8x8x8xf32, #tpu.memory_space<vmem>>, vector<8x8x8xf32>
    tpu.vector_store %arg3[%c0_9, %c0_10, %c0_11], %18 {strides = array<i32>} : memref<8x8x8xf32, #tpu.memory_space<vmem>>, vector<8x8x8xf32>,
    return
  }
  func.func @transform_0(%arg0: i32) -> (i32, i32, i32) {
    %c0_i32 = arith.constant 0 : i32
    %c0_i32_0 = arith.constant 0 : i32
    %c0_i32_1 = arith.constant 0 : i32
    return %arg0, %c0_i32, %c0_i32_0 : i32, i32, i32
  }
  func.func @transform_1(%arg0: i32) -> (i32, i32, i32) {
    %c0_i32 = arith.constant 0 : i32
    %c0_i32_0 = arith.constant 0 : i32
    %c0_i32_1 = arith.constant 0 : i32
    return %arg0, %c0_i32, %c0_i32_0 : i32, i32, i32
  }
  func.func @transform_2(%arg0: i32) -> (i32, i32, i32) {
    %c0_i32 = arith.constant 0 : i32
    %c0_i32_0 = arith.constant 0 : i32
    %c0_i32_1 = arith.constant 0 : i32
    return %arg0, %c0_i32, %c0_i32_0 : i32, i32, i32
  }
}

</mosaic_0001>

<llo_original>
// kernel: tpu_custom_call.1
$region0: #{tpu_custom_call.1}
  #allocation0 [shape = 'u32[]', space=smem, size = 0x4, offset = 0x4, fixed_abs, tag = 'smem constant byte address 0x4 - core index']
  #allocation1 [shape = 'u32[144,128]{1,0:T(1,128)}', space=vmem, size = 0x12000, scoped, tag = 'internal scratch']
  %s0 = inlined_call_operand.hbm [shape: f32[8,8,32], index: 0, kind: input, shape index: {}]
  %s1 = inlined_call_operand.hbm [shape: f32[8,8,32], index: 1, kind: input, shape index: {}]
  %s2 = inlined_call_operand.hbm [shape: f32[8,8,8], index: 2, kind: output, shape index: {}]
  %s3 = sld [smem:[#allocation0]]
  $region26: #{tpu_custom_call.1} parent=0
    _
  %s5 = ssub.s32 1, %s3
  %s6 = scalar_select 0, %s5, %s3
  $region1: #{tpu_custom_call.1} parent=0
    #allocation2 [shape = 'u8[32768]{0}', space=vmem, size = 0x8000, scoped, tag = 'input window, operand 0, single buffered']
    #allocation3 [shape = 's32[1]{0}', space=sflag, size = 0x4, scoped, tag = 'scoped memory for tpu_custom_call.1']
    #allocation4 [shape = 's32[1]{0}', space=sflag, size = 0x4, scoped, tag = 'scoped memory for tpu_custom_call.1']
    #allocation5 [shape = 'u8[32768]{0}', space=vmem, size = 0x8000, scoped, tag = 'input window, operand 1, single buffered']
    #allocation6 [shape = 's32[1]{0}', space=sflag, size = 0x4, scoped, tag = 'scoped memory for tpu_custom_call.1']
    #allocation7 [shape = 'u8[32768]{0}', space=vmem, size = 0x8000, scoped, tag = 'output window, operand 0, single buffered']
    %7 = vsyncpa [#allocation3], 0
    %8 = vsyncpa [#allocation6], 0
    %9 = vsyncpa [#allocation4], 0
    // Predicated region
    $region2: #{tpu_custom_call.1} parent=1 // pred_check
      _
    $region3: #{tpu_custom_call.1} parent=1 // pred_check_branch
      %11 = sbr.rel (0) target = $region5
    $region4: #{tpu_custom_call.1} parent=1 // pred_region
      %s13 = ssub.s32 1024, 1024
      %14 = vsyncadd [#allocation3], %s13
      %s15 = sshll.u32 [#allocation2], 4
      %s16 = int_to_ptr.vmem [resolvable:$true] %s15
      %21 = dma.hbm_to_vmem [thread:$0]  %s0, 1024, %s16, [#allocation3], 128, 128, 8
    $region5: #{tpu_custom_call.1} parent=1 // pred_fallthru
      _
    // Predicated region
    $region6: #{tpu_custom_call.1} parent=1 // pred_check
      _
    $region7: #{tpu_custom_call.1} parent=1 // pred_check_branch
      %23 = sbr.rel (0) target = $region9
    $region8: #{tpu_custom_call.1} parent=1 // pred_region
      %s25 = ssub.s32 1024, 1024
      %26 = vsyncadd [#allocation6], %s25
      %s27 = sshll.u32 [#allocation5], 4
      %s28 = int_to_ptr.vmem [resolvable:$true] %s27
      %33 = dma.hbm_to_vmem [thread:$0]  %s1, 1024, %s28, [#allocation6], 128, 128, 8
    $region9: #{tpu_custom_call.1} parent=1 // pred_fallthru
      _
    // Predicated region
    $region10: #{tpu_custom_call.1} parent=1 // pred_check
      _
    $region11: #{tpu_custom_call.1} parent=1 // pred_check_branch
      %35 = sbr.rel (0) target = $region13
    $region12: #{tpu_custom_call.1} parent=1 // pred_region
      %36 = dma.done [#allocation3], 1024
    $region13: #{tpu_custom_call.1} parent=1 // pred_fallthru
      _
    // Predicated region
    $region14: #{tpu_custom_call.1} parent=1 // pred_check
      _
    $region15: #{tpu_custom_call.1} parent=1 // pred_check_branch
      %38 = sbr.rel (0) target = $region17
    $region16: #{tpu_custom_call.1} parent=1 // pred_region
      %39 = dma.done [#allocation6], 1024
    $region17: #{tpu_custom_call.1} parent=1 // pred_fallthru
      _
    %v40 = vld [vmem:[#allocation2] sm:$0xff]
    %v41 = vld [vmem:[#allocation2 + $0x8] sm:$0xff]
    %v42 = vld [vmem:[#allocation2 + $0x10] sm:$0xff]
    %v43 = vld [vmem:[#allocation2 + $0x18] sm:$0xff]
    %v44 = vld [vmem:[#allocation2 + $0x20] sm:$0xff]
    %v45 = vld [vmem:[#allocation2 + $0x28] sm:$0xff]
    %v46 = vld [vmem:[#allocation2 + $0x30] sm:$0xff]
    %v47 = vld [vmem:[#allocation2 + $0x38] sm:$0xff]
    %v48 = vmul.f32 %v40, %v40
    %v49 = vmul.f32 %v41, %v41
    %v50 = vmul.f32 %v42, %v42
    %v51 = vmul.f32 %v43, %v43
    %v52 = vmul.f32 %v44, %v44
    %v53 = vmul.f32 %v45, %v45
    %v54 = vmul.f32 %v46, %v46
    %v55 = vmul.f32 %v47, %v47
    %vm56 = vcmask 261120
    %v57 = vsel %vm56, %v48, 0.0
    %58 = vadd.xlane.f32.xlu0 %v57
    %v59 = vpop.xlane.xlu0 %58
    %v60 = vsel %vm56, %v49, 0.0
    %61 = vadd.xlane.f32.xlu0 %v60
    %v62 = vpop.xlane.xlu0 %61
    %v63 = vsel %vm56, %v50, 0.0
    %64 = vadd.xlane.f32.xlu0 %v63
    %v65 = vpop.xlane.xlu0 %64
    %v66 = vsel %vm56, %v51, 0.0
    %67 = vadd.xlane.f32.xlu0 %v66
    %v68 = vpop.xlane.xlu0 %67
    %v69 = vsel %vm56, %v52, 0.0
    %70 = vadd.xlane.f32.xlu0 %v69
    %v71 = vpop.xlane.xlu0 %70
    %v72 = vsel %vm56, %v53, 0.0
    %73 = vadd.xlane.f32.xlu0 %v72
    %v74 = vpop.xlane.xlu0 %73
    %v75 = vsel %vm56, %v54, 0.0
    %76 = vadd.xlane.f32.xlu0 %v75
    %v77 = vpop.xlane.xlu0 %76
    %v78 = vsel %vm56, %v55, 0.0
    %79 = vadd.xlane.f32.xlu0 %v78
    %v80 = vpop.xlane.xlu0 %79
    %v81 = vmax.f32 %v59, 1e-24
    %v82 = vmax.f32 %v62, 1e-24
    %v83 = vmax.f32 %v65, 1e-24
    %v84 = vmax.f32 %v68, 1e-24
    %v85 = vmax.f32 %v71, 1e-24
    %v86 = vmax.f32 %v74, 1e-24
    %v87 = vmax.f32 %v77, 1e-24
    %v88 = vmax.f32 %v80, 1e-24
    %v89 = vrsqrt.pop %v81
    %v90 = vrsqrt.pop %v82
    %v91 = vrsqrt.pop %v83
    %v92 = vrsqrt.pop %v84
    %v93 = vrsqrt.pop %v85
    %v94 = vrsqrt.pop %v86
    %v95 = vrsqrt.pop %v87
    %v96 = vrsqrt.pop %v88
    %v97 = vmul.f32 %v40, %v89
    %v98 = vmul.f32 %v41, %v90
    %v99 = vmul.f32 %v42, %v91
    %v100 = vmul.f32 %v43, %v92
    %v101 = vmul.f32 %v44, %v93
    %v102 = vmul.f32 %v45, %v94
    %v103 = vmul.f32 %v46, %v95
    %v104 = vmul.f32 %v47, %v96
    %v105 = vld [vmem:[#allocation5] sm:$0xff]
    %v106 = vld [vmem:[#allocation5 + $0x8] sm:$0xff]
    %v107 = vld [vmem:[#allocation5 + $0x10] sm:$0xff]
    %v108 = vld [vmem:[#allocation5 + $0x18] sm:$0xff]
    %v109 = vld [vmem:[#allocation5 + $0x20] sm:$0xff]
    %v110 = vld [vmem:[#allocation5 + $0x28] sm:$0xff]
    %v111 = vld [vmem:[#allocation5 + $0x30] sm:$0xff]
    %v112 = vld [vmem:[#allocation5 + $0x38] sm:$0xff]
    %v113 = vmul.f32 %v105, %v105
    %v114 = vmul.f32 %v106, %v106
    %v115 = vmul.f32 %v107, %v107
    %v116 = vmul.f32 %v108, %v108
    %v117 = vmul.f32 %v109, %v109
    %v118 = vmul.f32 %v110, %v110
    %v119 = vmul.f32 %v111, %v111
    %v120 = vmul.f32 %v112, %v112
    %v121 = vsel %vm56, %v113, 0.0
    %122 = vadd.xlane.f32.xlu0 %v121
    %v123 = vpop.xlane.xlu0 %122
    %v124 = vsel %vm56, %v114, 0.0
    %125 = vadd.xlane.f32.xlu0 %v124
    %v126 = vpop.xlane.xlu0 %125
    %v127 = vsel %vm56, %v115, 0.0
    %128 = vadd.xlane.f32.xlu0 %v127
    %v129 = vpop.xlane.xlu0 %128
    %v130 = vsel %vm56, %v116, 0.0
    %131 = vadd.xlane.f32.xlu0 %v130
    %v132 = vpop.xlane.xlu0 %131
    %v133 = vsel %vm56, %v117, 0.0
    %134 = vadd.xlane.f32.xlu0 %v133
    %v135 = vpop.xlane.xlu0 %134
    %v136 = vsel %vm56, %v118, 0.0
    %137 = vadd.xlane.f32.xlu0 %v136
    %v138 = vpop.xlane.xlu0 %137
    %v139 = vsel %vm56, %v119, 0.0
    %140 = vadd.xlane.f32.xlu0 %v139
    %v141 = vpop.xlane.xlu0 %140
    %v142 = vsel %vm56, %v120, 0.0
    %143 = vadd.xlane.f32.xlu0 %v142
    %v144 = vpop.xlane.xlu0 %143
    %v145 = vmax.f32 %v123, 1e-24
    %v146 = vmax.f32 %v126, 1e-24
    %v147 = vmax.f32 %v129, 1e-24
    %v148 = vmax.f32 %v132, 1e-24
    %v149 = vmax.f32 %v135, 1e-24
    %v150 = vmax.f32 %v138, 1e-24
    %v151 = vmax.f32 %v141, 1e-24
    %v152 = vmax.f32 %v144, 1e-24
    %v153 = vrsqrt.pop %v145
    %v154 = vrsqrt.pop %v146
    %v155 = vrsqrt.pop %v147
    %v156 = vrsqrt.pop %v148
    %v157 = vrsqrt.pop %v149
    %v158 = vrsqrt.pop %v150
    %v159 = vrsqrt.pop %v151
    %v160 = vrsqrt.pop %v152
    %v161 = vmul.f32 %v105, %v153
    %v162 = vmul.f32 %v106, %v154
    %v163 = vmul.f32 %v107, %v155
    %v164 = vmul.f32 %v108, %v156
    %v165 = vmul.f32 %v109, %v157
    %v166 = vmul.f32 %v110, %v158
    %v167 = vmul.f32 %v111, %v159
    %v168 = vmul.f32 %v112, %v160
    %v170 = vsel %vm56, %v97, 0
    %v173 = vsel %vm56, %v161, 0
    %175 = vmatprep.subr.mxu0 0.0
    %176 = vmatpush1.xpose.msra.mxu0 %v173
    %177 = vmatprep.subr.mxu0 0.0
    %178 = vmatpush1.xpose.msra.mxu0 0.0
    %179 = vmatprep.subr.mxu0 0.0
    %180 = vmatpush1.xpose.msra.mxu0 0.0
    %181 = vmatprep.subr.mxu0 0.0
    %182 = vmatpush1.xpose.msra.mxu0 0.0
    %183 = vmatprep.subr.mxu0 0.0
    %184 = vmatpush1.xpose.msra.mxu0 0.0
    %185 = vmatprep.subr.mxu0 0.0
    %186 = vmatpush1.xpose.msra.mxu0 0.0
    %187 = vmatprep.subr.mxu0 0.0
    %188 = vmatpush1.xpose.msra.mxu0 0.0
    %189 = vmatprep.subr.mxu0 0.0
    %190 = vmatpush1.xpose.msra.mxu0 0.0
    %191 = vmatprep.subr.mxu0 0.0
    %192 = vmatpush1.xpose.msra.mxu0 0.0
    %193 = vmatprep.subr.mxu0 0.0
    %194 = vmatpush1.xpose.msra.mxu0 0.0
    %195 = vmatprep.subr.mxu0 0.0
    %196 = vmatpush1.xpose.msra.mxu0 0.0
    %197 = vmatprep.subr.mxu0 0.0
    %198 = vmatpush1.xpose.msra.mxu0 0.0
    %199 = vmatprep.subr.mxu0 0.0
    %200 = vmatpush1.xpose.msra.mxu0 0.0
    %201 = vmatprep.subr.mxu0 0.0
    %202 = vmatpush1.xpose.msra.mxu0 0.0
    %203 = vmatprep.subr.mxu0 0.0
    %204 = vmatpush1.xpose.msra.mxu0 0.0
    %205 = vmatprep.subr.mxu0 0.0
    %206 = vmatpush1.xpose.msra.mxu0 0.0
    %207 = vmatprep.subr.mxu0 0.0
    %208 = vmatpush1.xpose.msra.mxu0 0.0
    %209 = vmatprep.subr.mxu0 0.0
    %210 = vmatpush1.xpose.msra.mxu0 0.0
    %211 = vmatprep.subr.mxu0 0.0
    %212 = vmatpush1.xpose.msra.mxu0 0.0
    %213 = vmatprep.subr.mxu0 0.0
    %214 = vmatpush1.xpose.msra.mxu0 0.0
    %215 = vmatprep.subr.mxu0 0.0
    %216 = vmatpush1.xpose.msra.mxu0 0.0
    %217 = vmatprep.subr.mxu0 0.0
    %218 = vmatpush1.xpose.msra.mxu0 0.0
    %219 = vmatprep.subr.mxu0 0.0
    %220 = vmatpush1.xpose.msra.mxu0 0.0
    %221 = vmatprep.subr.mxu0 0.0
    %222 = vmatpush1.xpose.msra.mxu0 0.0
    %223 = vmatprep.subr.mxu0 0.0
    %224 = vmatpush1.xpose.msra.mxu0 0.0
    %225 = vmatprep.subr.mxu0 0.0
    %226 = vmatpush1.xpose.msra.mxu0 0.0
    %227 = vmatprep.subr.mxu0 0.0
    %228 = vmatpush1.xpose.msra.mxu0 0.0
    %229 = vmatprep.subr.mxu0 0.0
    %230 = vmatpush1.xpose.msra.mxu0 0.0
    %231 = vmatprep.subr.mxu0 0.0
    %232 = vmatpush1.xpose.msra.mxu0 0.0
    %233 = vmatprep.subr.mxu0 0.0
    %234 = vmatpush1.xpose.msra.mxu0 0.0
    %235 = vmatprep.subr.mxu0 0.0
    %236 = vmatpush1.xpose.msra.mxu0 0.0
    %237 = vmatprep.subr.mxu0 0.0
    %238 = vmatpush1.xpose.msra.mxu0 0.0
    %239 = vmatprep.mubr.f32.mxu0 0.0
    %240 = vmatmul.mubr.f32.gmra.mrb[0].mxu0 %v170
    %v241 = vpop.f32.mrb[0].mxu0
    %v242 = vadd.f32 0.0, %v241
    %v243 = vpop.f32.mrb[0].mxu0
    %244 = vdwg.mxu0
    %v246 = vsel %vm56, %v98, 0
    %v249 = vsel %vm56, %v162, 0
    %251 = vmatprep.subr.mxu0 0.0
    %252 = vmatpush1.xpose.msra.mxu0 %v249
    %253 = vmatprep.subr.mxu0 0.0
    %254 = vmatpush1.xpose.msra.mxu0 0.0
    %255 = vmatprep.subr.mxu0 0.0
    %256 = vmatpush1.xpose.msra.mxu0 0.0
    %257 = vmatprep.subr.mxu0 0.0
    %258 = vmatpush1.xpose.msra.mxu0 0.0
    %259 = vmatprep.subr.mxu0 0.0
    %260 = vmatpush1.xpose.msra.mxu0 0.0
    %261 = vmatprep.subr.mxu0 0.0
    %262 = vmatpush1.xpose.msra.mxu0 0.0
    %263 = vmatprep.subr.mxu0 0.0
    %264 = vmatpush1.xpose.msra.mxu0 0.0
    %265 = vmatprep.subr.mxu0 0.0
    %266 = vmatpush1.xpose.msra.mxu0 0.0
    %267 = vmatprep.subr.mxu0 0.0
    %268 = vmatpush1.xpose.msra.mxu0 0.0
    %269 = vmatprep.subr.mxu0 0.0
    %270 = vmatpush1.xpose.msra.mxu0 0.0
    %271 = vmatprep.subr.mxu0 0.0
    %272 = vmatpush1.xpose.msra.mxu0 0.0
    %273 = vmatprep.subr.mxu0 0.0
    %274 = vmatpush1.xpose.msra.mxu0 0.0
    %275 = vmatprep.subr.mxu0 0.0
    %276 = vmatpush1.xpose.msra.mxu0 0.0
    %277 = vmatprep.subr.mxu0 0.0
    %278 = vmatpush1.xpose.msra.mxu0 0.0
    %279 = vmatprep.subr.mxu0 0.0
    %280 = vmatpush1.xpose.msra.mxu0 0.0
    %281 = vmatprep.subr.mxu0 0.0
    %282 = vmatpush1.xpose.msra.mxu0 0.0
    %283 = vmatprep.subr.mxu0 0.0
    %284 = vmatpush1.xpose.msra.mxu0 0.0
    %285 = vmatprep.subr.mxu0 0.0
    %286 = vmatpush1.xpose.msra.mxu0 0.0
    %287 = vmatprep.subr.mxu0 0.0
    %288 = vmatpush1.xpose.msra.mxu0 0.0
    %289 = vmatprep.subr.mxu0 0.0
    %290 = vmatpush1.xpose.msra.mxu0 0.0
    %291 = vmatprep.subr.mxu0 0.0
    %292 = vmatpush1.xpose.msra.mxu0 0.0
    %293 = vmatprep.subr.mxu0 0.0
    %294 = vmatpush1.xpose.msra.mxu0 0.0
    %295 = vmatprep.subr.mxu0 0.0
    %296 = vmatpush1.xpose.msra.mxu0 0.0
    %297 = vmatprep.subr.mxu0 0.0
    %298 = vmatpush1.xpose.msra.mxu0 0.0
    %299 = vmatprep.subr.mxu0 0.0
    %300 = vmatpush1.xpose.msra.mxu0 0.0
    %301 = vmatprep.subr.mxu0 0.0
    %302 = vmatpush1.xpose.msra.mxu0 0.0
    %303 = vmatprep.subr.mxu0 0.0
    %304 = vmatpush1.xpose.msra.mxu0 0.0
    %305 = vmatprep.subr.mxu0 0.0
    %306 = vmatpush1.xpose.msra.mxu0 0.0
    %307 = vmatprep.subr.mxu0 0.0
    %308 = vmatpush1.xpose.msra.mxu0 0.0
    %309 = vmatprep.subr.mxu0 0.0
    %310 = vmatpush1.xpose.msra.mxu0 0.0
    %311 = vmatprep.subr.mxu0 0.0
    %312 = vmatpush1.xpose.msra.mxu0 0.0
    %313 = vmatprep.subr.mxu0 0.0
    %314 = vmatpush1.xpose.msra.mxu0 0.0
    %315 = vmatprep.mubr.f32.mxu0 0.0
    %316 = vmatmul.mubr.f32.gmra.mrb[0].mxu0 %v246
    %v317 = vpop.f32.mrb[0].mxu0
    %v318 = vadd.f32 0.0, %v317
    %v319 = vpop.f32.mrb[0].mxu0
    %320 = vdwg.mxu0
    %v322 = vsel %vm56, %v99, 0
    %v325 = vsel %vm56, %v163, 0
    %327 = vmatprep.subr.mxu0 0.0
    %328 = vmatpush1.xpose.msra.mxu0 %v325
    %329 = vmatprep.subr.mxu0 0.0
    %330 = vmatpush1.xpose.msra.mxu0 0.0
    %331 = vmatprep.subr.mxu0 0.0
    %332 = vmatpush1.xpose.msra.mxu0 0.0
    %333 = vmatprep.subr.mxu0 0.0
    %334 = vmatpush1.xpose.msra.mxu0 0.0
    %335 = vmatprep.subr.mxu0 0.0
    %336 = vmatpush1.xpose.msra.mxu0 0.0
    %337 = vmatprep.subr.mxu0 0.0
    %338 = vmatpush1.xpose.msra.mxu0 0.0
    %339 = vmatprep.subr.mxu0 0.0
    %340 = vmatpush1.xpose.msra.mxu0 0.0
    %341 = vmatprep.subr.mxu0 0.0
    %342 = vmatpush1.xpose.msra.mxu0 0.0
    %343 = vmatprep.subr.mxu0 0.0
    %344 = vmatpush1.xpose.msra.mxu0 0.0
    %345 = vmatprep.subr.mxu0 0.0
    %346 = vmatpush1.xpose.msra.mxu0 0.0
    %347 = vmatprep.subr.mxu0 0.0
    %348 = vmatpush1.xpose.msra.mxu0 0.0
    %349 = vmatprep.subr.mxu0 0.0
    %350 = vmatpush1.xpose.msra.mxu0 0.0
    %351 = vmatprep.subr.mxu0 0.0
    %352 = vmatpush1.xpose.msra.mxu0 0.0
    %353 = vmatprep.subr.mxu0 0.0
    %354 = vmatpush1.xpose.msra.mxu0 0.0
    %355 = vmatprep.subr.mxu0 0.0
    %356 = vmatpush1.xpose.msra.mxu0 0.0
    %357 = vmatprep.subr.mxu0 0.0
    %358 = vmatpush1.xpose.msra.mxu0 0.0
    %359 = vmatprep.subr.mxu0 0.0
    %360 = vmatpush1.xpose.msra.mxu0 0.0
    %361 = vmatprep.subr.mxu0 0.0
    %362 = vmatpush1.xpose.msra.mxu0 0.0
    %363 = vmatprep.subr.mxu0 0.0
    %364 = vmatpush1.xpose.msra.mxu0 0.0
    %365 = vmatprep.subr.mxu0 0.0
    %366 = vmatpush1.xpose.msra.mxu0 0.0
    %367 = vmatprep.subr.mxu0 0.0
    %368 = vmatpush1.xpose.msra.mxu0 0.0
    %369 = vmatprep.subr.mxu0 0.0
    %370 = vmatpush1.xpose.msra.mxu0 0.0
    %371 = vmatprep.subr.mxu0 0.0
    %372 = vmatpush1.xpose.msra.mxu0 0.0
    %373 = vmatprep.subr.mxu0 0.0
    %374 = vmatpush1.xpose.msra.mxu0 0.0
    %375 = vmatprep.subr.mxu0 0.0
    %376 = vmatpush1.xpose.msra.mxu0 0.0
    %377 = vmatprep.subr.mxu0 0.0
    %378 = vmatpush1.xpose.msra.mxu0 0.0
    %379 = vmatprep.subr.mxu0 0.0
    %380 = vmatpush1.xpose.msra.mxu0 0.0
    %381 = vmatprep.subr.mxu0 0.0
    %382 = vmatpush1.xpose.msra.mxu0 0.0
    %383 = vmatprep.subr.mxu0 0.0
    %384 = vmatpush1.xpose.msra.mxu0 0.0
    %385 = vmatprep.subr.mxu0 0.0
    %386 = vmatpush1.xpose.msra.mxu0 0.0
    %387 = vmatprep.subr.mxu0 0.0
    %388 = vmatpush1.xpose.msra.mxu0 0.0
    %389 = vmatprep.subr.mxu0 0.0
    %390 = vmatpush1.xpose.msra.mxu0 0.0
    %391 = vmatprep.mubr.f32.mxu0 0.0
    %392 = vmatmul.mubr.f32.gmra.mrb[0].mxu0 %v322
    %v393 = vpop.f32.mrb[0].mxu0
    %v394 = vadd.f32 0.0, %v393
    %v395 = vpop.f32.mrb[0].mxu0
    %396 = vdwg.mxu0
    %v398 = vsel %vm56, %v100, 0
    %v401 = vsel %vm56, %v164, 0
    %403 = vmatprep.subr.mxu0 0.0
    %404 = vmatpush1.xpose.msra.mxu0 %v401
    %405 = vmatprep.subr.mxu0 0.0
    %406 = vmatpush1.xpose.msra.mxu0 0.0
    %407 = vmatprep.subr.mxu0 0.0
    %408 = vmatpush1.xpose.msra.mxu0 0.0
    %409 = vmatprep.subr.mxu0 0.0
    %410 = vmatpush1.xpose.msra.mxu0 0.0
    %411 = vmatprep.subr.mxu0 0.0
    %412 = vmatpush1.xpose.msra.mxu0 0.0
    %413 = vmatprep.subr.mxu0 0.0
    %414 = vmatpush1.xpose.msra.mxu0 0.0
    %415 = vmatprep.subr.mxu0 0.0
    %416 = vmatpush1.xpose.msra.mxu0 0.0
    %417 = vmatprep.subr.mxu0 0.0
    %418 = vmatpush1.xpose.msra.mxu0 0.0
    %419 = vmatprep.subr.mxu0 0.0
    %420 = vmatpush1.xpose.msra.mxu0 0.0
    %421 = vmatprep.subr.mxu0 0.0
    %422 = vmatpush1.xpose.msra.mxu0 0.0
    %423 = vmatprep.subr.mxu0 0.0
    %424 = vmatpush1.xpose.msra.mxu0 0.0
    %425 = vmatprep.subr.mxu0 0.0
    %426 = vmatpush1.xpose.msra.mxu0 0.0
    %427 = vmatprep.subr.mxu0 0.0
    %428 = vmatpush1.xpose.msra.mxu0 0.0
    %429 = vmatprep.subr.mxu0 0.0
    %430 = vmatpush1.xpose.msra.mxu0 0.0
    %431 = vmatprep.subr.mxu0 0.0
    %432 = vmatpush1.xpose.msra.mxu0 0.0
    %433 = vmatprep.subr.mxu0 0.0
    %434 = vmatpush1.xpose.msra.mxu0 0.0
    %435 = vmatprep.subr.mxu0 0.0
    %436 = vmatpush1.xpose.msra.mxu0 0.0
    %437 = vmatprep.subr.mxu0 0.0
    %438 = vmatpush1.xpose.msra.mxu0 0.0
    %439 = vmatprep.subr.mxu0 0.0
    %440 = vmatpush1.xpose.msra.mxu0 0.0
    %441 = vmatprep.subr.mxu0 0.0
    %442 = vmatpush1.xpose.msra.mxu0 0.0
    %443 = vmatprep.subr.mxu0 0.0
    %444 = vmatpush1.xpose.msra.mxu0 0.0
    %445 = vmatprep.subr.mxu0 0.0
    %446 = vmatpush1.xpose.msra.mxu0 0.0
    %447 = vmatprep.subr.mxu0 0.0
    %448 = vmatpush1.xpose.msra.mxu0 0.0
    %449 = vmatprep.subr.mxu0 0.0
    %450 = vmatpush1.xpose.msra.mxu0 0.0
    %451 = vmatprep.subr.mxu0 0.0
    %452 = vmatpush1.xpose.msra.mxu0 0.0
    %453 = vmatprep.subr.mxu0 0.0
    %454 = vmatpush1.xpose.msra.mxu0 0.0
    %455 = vmatprep.subr.mxu0 0.0
    %456 = vmatpush1.xpose.msra.mxu0 0.0
    %457 = vmatprep.subr.mxu0 0.0
    %458 = vmatpush1.xpose.msra.mxu0 0.0
    %459 = vmatprep.subr.mxu0 0.0
    %460 = vmatpush1.xpose.msra.mxu0 0.0
    %461 = vmatprep.subr.mxu0 0.0
    %462 = vmatpush1.xpose.msra.mxu0 0.0
    %463 = vmatprep.subr.mxu0 0.0
    %464 = vmatpush1.xpose.msra.mxu0 0.0
    %465 = vmatprep.subr.mxu0 0.0
    %466 = vmatpush1.xpose.msra.mxu0 0.0
    %467 = vmatprep.mubr.f32.mxu0 0.0
    %468 = vmatmul.mubr.f32.gmra.mrb[0].mxu0 %v398
    %v469 = vpop.f32.mrb[0].mxu0
    %v470 = vadd.f32 0.0, %v469
    %v471 = vpop.f32.mrb[0].mxu0
    %472 = vdwg.mxu0
    %v474 = vsel %vm56, %v101, 0
    %v477 = vsel %vm56, %v165, 0
    %479 = vmatprep.subr.mxu0 0.0
    %480 = vmatpush1.xpose.msra.mxu0 %v477
    %481 = vmatprep.subr.mxu0 0.0
    %482 = vmatpush1.xpose.msra.mxu0 0.0
    %483 = vmatprep.subr.mxu0 0.0
    %484 = vmatpush1.xpose.msra.mxu0 0.0
    %485 = vmatprep.subr.mxu0 0.0
    %486 = vmatpush1.xpose.msra.mxu0 0.0
    %487 = vmatprep.subr.mxu0 0.0
    %488 = vmatpush1.xpose.msra.mxu0 0.0
    %489 = vmatprep.subr.mxu0 0.0
    %490 = vmatpush1.xpose.msra.mxu0 0.0
    %491 = vmatprep.subr.mxu0 0.0
    %492 = vmatpush1.xpose.msra.mxu0 0.0
    %493 = vmatprep.subr.mxu0 0.0
    %494 = vmatpush1.xpose.msra.mxu0 0.0
    %495 = vmatprep.subr.mxu0 0.0
    %496 = vmatpush1.xpose.msra.mxu0 0.0
    %497 = vmatprep.subr.mxu0 0.0
    %498 = vmatpush1.xpose.msra.mxu0 0.0
    %499 = vmatprep.subr.mxu0 0.0
    %500 = vmatpush1.xpose.msra.mxu0 0.0
    %501 = vmatprep.subr.mxu0 0.0
    %502 = vmatpush1.xpose.msra.mxu0 0.0
    %503 = vmatprep.subr.mxu0 0.0
    %504 = vmatpush1.xpose.msra.mxu0 0.0
    %505 = vmatprep.subr.mxu0 0.0
    %506 = vmatpush1.xpose.msra.mxu0 0.0
    %507 = vmatprep.subr.mxu0 0.0
    %508 = vmatpush1.xpose.msra.mxu0 0.0
    %509 = vmatprep.subr.mxu0 0.0
    %510 = vmatpush1.xpose.msra.mxu0 0.0
    %511 = vmatprep.subr.mxu0 0.0
    %512 = vmatpush1.xpose.msra.mxu0 0.0
    %513 = vmatprep.subr.mxu0 0.0
    %514 = vmatpush1.xpose.msra.mxu0 0.0
    %515 = vmatprep.subr.mxu0 0.0
    %516 = vmatpush1.xpose.msra.mxu0 0.0
    %517 = vmatprep.subr.mxu0 0.0
    %518 = vmatpush1.xpose.msra.mxu0 0.0
    %519 = vmatprep.subr.mxu0 0.0
    %520 = vmatpush1.xpose.msra.mxu0 0.0
    %521 = vmatprep.subr.mxu0 0.0
    %522 = vmatpush1.xpose.msra.mxu0 0.0
    %523 = vmatprep.subr.mxu0 0.0
    %524 = vmatpush1.xpose.msra.mxu0 0.0
    %525 = vmatprep.subr.mxu0 0.0
    %526 = vmatpush1.xpose.msra.mxu0 0.0
    %527 = vmatprep.subr.mxu0 0.0
    %528 = vmatpush1.xpose.msra.mxu0 0.0
    %529 = vmatprep.subr.mxu0 0.0
    %530 = vmatpush1.xpose.msra.mxu0 0.0
    %531 = vmatprep.subr.mxu0 0.0
    %532 = vmatpush1.xpose.msra.mxu0 0.0
    %533 = vmatprep.subr.mxu0 0.0
    %534 = vmatpush1.xpose.msra.mxu0 0.0
    %535 = vmatprep.subr.mxu0 0.0
    %536 = vmatpush1.xpose.msra.mxu0 0.0
    %537 = vmatprep.subr.mxu0 0.0
    %538 = vmatpush1.xpose.msra.mxu0 0.0
    %539 = vmatprep.subr.mxu0 0.0
    %540 = vmatpush1.xpose.msra.mxu0 0.0
    %541 = vmatprep.subr.mxu0 0.0
    %542 = vmatpush1.xpose.msra.mxu0 0.0
    %543 = vmatprep.mubr.f32.mxu0 0.0
    %544 = vmatmul.mubr.f32.gmra.mrb[0].mxu0 %v474
    %v545 = vpop.f32.mrb[0].mxu0
    %v546 = vadd.f32 0.0, %v545
    %v547 = vpop.f32.mrb[0].mxu0
    %548 = vdwg.mxu0
    %v550 = vsel %vm56, %v102, 0
    %v553 = vsel %vm56, %v166, 0
    %555 = vmatprep.subr.mxu0 0.0
    %556 = vmatpush1.xpose.msra.mxu0 %v553
    %557 = vmatprep.subr.mxu0 0.0
    %558 = vmatpush1.xpose.msra.mxu0 0.0
    %559 = vmatprep.subr.mxu0 0.0
    %560 = vmatpush1.xpose.msra.mxu0 0.0
    %561 = vmatprep.subr.mxu0 0.0
    %562 = vmatpush1.xpose.msra.mxu0 0.0
    %563 = vmatprep.subr.mxu0 0.0
    %564 = vmatpush1.xpose.msra.mxu0 0.0
    %565 = vmatprep.subr.mxu0 0.0
    %566 = vmatpush1.xpose.msra.mxu0 0.0
    %567 = vmatprep.subr.mxu0 0.0
    %568 = vmatpush1.xpose.msra.mxu0 0.0
    %569 = vmatprep.subr.mxu0 0.0
    %570 = vmatpush1.xpose.msra.mxu0 0.0
    %571 = vmatprep.subr.mxu0 0.0
    %572 = vmatpush1.xpose.msra.mxu0 0.0
    %573 = vmatprep.subr.mxu0 0.0
    %574 = vmatpush1.xpose.msra.mxu0 0.0
    %575 = vmatprep.subr.mxu0 0.0
    %576 = vmatpush1.xpose.msra.mxu0 0.0
    %577 = vmatprep.subr.mxu0 0.0
    %578 = vmatpush1.xpose.msra.mxu0 0.0
    %579 = vmatprep.subr.mxu0 0.0
    %580 = vmatpush1.xpose.msra.mxu0 0.0
    %581 = vmatprep.subr.mxu0 0.0
    %582 = vmatpush1.xpose.msra.mxu0 0.0
    %583 = vmatprep.subr.mxu0 0.0
    %584 = vmatpush1.xpose.msra.mxu0 0.0
    %585 = vmatprep.subr.mxu0 0.0
    %586 = vmatpush1.xpose.msra.mxu0 0.0
    %587 = vmatprep.subr.mxu0 0.0
    %588 = vmatpush1.xpose.msra.mxu0 0.0
    %589 = vmatprep.subr.mxu0 0.0
    %590 = vmatpush1.xpose.msra.mxu0 0.0
    %591 = vmatprep.subr.mxu0 0.0
    %592 = vmatpush1.xpose.msra.mxu0 0.0
    %593 = vmatprep.subr.mxu0 0.0
    %594 = vmatpush1.xpose.msra.mxu0 0.0
    %595 = vmatprep.subr.mxu0 0.0
    %596 = vmatpush1.xpose.msra.mxu0 0.0
    %597 = vmatprep.subr.mxu0 0.0
    %598 = vmatpush1.xpose.msra.mxu0 0.0
    %599 = vmatprep.subr.mxu0 0.0
    %600 = vmatpush1.xpose.msra.mxu0 0.0
    %601 = vmatprep.subr.mxu0 0.0
    %602 = vmatpush1.xpose.msra.mxu0 0.0
    %603 = vmatprep.subr.mxu0 0.0
    %604 = vmatpush1.xpose.msra.mxu0 0.0
    %605 = vmatprep.subr.mxu0 0.0
    %606 = vmatpush1.xpose.msra.mxu0 0.0
    %607 = vmatprep.subr.mxu0 0.0
    %608 = vmatpush1.xpose.msra.mxu0 0.0
    %609 = vmatprep.subr.mxu0 0.0
    %610 = vmatpush1.xpose.msra.mxu0 0.0
    %611 = vmatprep.subr.mxu0 0.0
    %612 = vmatpush1.xpose.msra.mxu0 0.0
    %613 = vmatprep.subr.mxu0 0.0
    %614 = vmatpush1.xpose.msra.mxu0 0.0
    %615 = vmatprep.subr.mxu0 0.0
    %616 = vmatpush1.xpose.msra.mxu0 0.0
    %617 = vmatprep.subr.mxu0 0.0
    %618 = vmatpush1.xpose.msra.mxu0 0.0
    %619 = vmatprep.mubr.f32.mxu0 0.0
    %620 = vmatmul.mubr.f32.gmra.mrb[0].mxu0 %v550
    %v621 = vpop.f32.mrb[0].mxu0
    %v622 = vadd.f32 0.0, %v621
    %v623 = vpop.f32.mrb[0].mxu0
    %624 = vdwg.mxu0
    %v626 = vsel %vm56, %v103, 0
    %v629 = vsel %vm56, %v167, 0
    %631 = vmatprep.subr.mxu0 0.0
    %632 = vmatpush1.xpose.msra.mxu0 %v629
    %633 = vmatprep.subr.mxu0 0.0
    %634 = vmatpush1.xpose.msra.mxu0 0.0
    %635 = vmatprep.subr.mxu0 0.0
    %636 = vmatpush1.xpose.msra.mxu0 0.0
    %637 = vmatprep.subr.mxu0 0.0
    %638 = vmatpush1.xpose.msra.mxu0 0.0
    %639 = vmatprep.subr.mxu0 0.0
    %640 = vmatpush1.xpose.msra.mxu0 0.0
    %641 = vmatprep.subr.mxu0 0.0
    %642 = vmatpush1.xpose.msra.mxu0 0.0
    %643 = vmatprep.subr.mxu0 0.0
    %644 = vmatpush1.xpose.msra.mxu0 0.0
    %645 = vmatprep.subr.mxu0 0.0
    %646 = vmatpush1.xpose.msra.mxu0 0.0
    %647 = vmatprep.subr.mxu0 0.0
    %648 = vmatpush1.xpose.msra.mxu0 0.0
    %649 = vmatprep.subr.mxu0 0.0
    %650 = vmatpush1.xpose.msra.mxu0 0.0
    %651 = vmatprep.subr.mxu0 0.0
    %652 = vmatpush1.xpose.msra.mxu0 0.0
    %653 = vmatprep.subr.mxu0 0.0
    %654 = vmatpush1.xpose.msra.mxu0 0.0
    %655 = vmatprep.subr.mxu0 0.0
    %656 = vmatpush1.xpose.msra.mxu0 0.0
    %657 = vmatprep.subr.mxu0 0.0
    %658 = vmatpush1.xpose.msra.mxu0 0.0
    %659 = vmatprep.subr.mxu0 0.0
    %660 = vmatpush1.xpose.msra.mxu0 0.0
    %661 = vmatprep.subr.mxu0 0.0
    %662 = vmatpush1.xpose.msra.mxu0 0.0
    %663 = vmatprep.subr.mxu0 0.0
    %664 = vmatpush1.xpose.msra.mxu0 0.0
    %665 = vmatprep.subr.mxu0 0.0
    %666 = vmatpush1.xpose.msra.mxu0 0.0
    %667 = vmatprep.subr.mxu0 0.0
    %668 = vmatpush1.xpose.msra.mxu0 0.0
    %669 = vmatprep.subr.mxu0 0.0
    %670 = vmatpush1.xpose.msra.mxu0 0.0
    %671 = vmatprep.subr.mxu0 0.0
    %672 = vmatpush1.xpose.msra.mxu0 0.0
    %673 = vmatprep.subr.mxu0 0.0
    %674 = vmatpush1.xpose.msra.mxu0 0.0
    %675 = vmatprep.subr.mxu0 0.0
    %676 = vmatpush1.xpose.msra.mxu0 0.0
    %677 = vmatprep.subr.mxu0 0.0
    %678 = vmatpush1.xpose.msra.mxu0 0.0
    %679 = vmatprep.subr.mxu0 0.0
    %680 = vmatpush1.xpose.msra.mxu0 0.0
    %681 = vmatprep.subr.mxu0 0.0
    %682 = vmatpush1.xpose.msra.mxu0 0.0
    %683 = vmatprep.subr.mxu0 0.0
    %684 = vmatpush1.xpose.msra.mxu0 0.0
    %685 = vmatprep.subr.mxu0 0.0
    %686 = vmatpush1.xpose.msra.mxu0 0.0
    %687 = vmatprep.subr.mxu0 0.0
    %688 = vmatpush1.xpose.msra.mxu0 0.0
    %689 = vmatprep.subr.mxu0 0.0
    %690 = vmatpush1.xpose.msra.mxu0 0.0
    %691 = vmatprep.subr.mxu0 0.0
    %692 = vmatpush1.xpose.msra.mxu0 0.0
    %693 = vmatprep.subr.mxu0 0.0
    %694 = vmatpush1.xpose.msra.mxu0 0.0
    %695 = vmatprep.mubr.f32.mxu0 0.0
    %696 = vmatmul.mubr.f32.gmra.mrb[0].mxu0 %v626
    %v697 = vpop.f32.mrb[0].mxu0
    %v698 = vadd.f32 0.0, %v697
    %v699 = vpop.f32.mrb[0].mxu0
    %700 = vdwg.mxu0
    %v702 = vsel %vm56, %v104, 0
    %v705 = vsel %vm56, %v168, 0
    %707 = vmatprep.subr.mxu0 0.0
    %708 = vmatpush1.xpose.msra.mxu0 %v705
    %709 = vmatprep.subr.mxu0 0.0
    %710 = vmatpush1.xpose.msra.mxu0 0.0
    %711 = vmatprep.subr.mxu0 0.0
    %712 = vmatpush1.xpose.msra.mxu0 0.0
    %713 = vmatprep.subr.mxu0 0.0
    %714 = vmatpush1.xpose.msra.mxu0 0.0
    %715 = vmatprep.subr.mxu0 0.0
    %716 = vmatpush1.xpose.msra.mxu0 0.0
    %717 = vmatprep.subr.mxu0 0.0
    %718 = vmatpush1.xpose.msra.mxu0 0.0
    %719 = vmatprep.subr.mxu0 0.0
    %720 = vmatpush1.xpose.msra.mxu0 0.0
    %721 = vmatprep.subr.mxu0 0.0
    %722 = vmatpush1.xpose.msra.mxu0 0.0
    %723 = vmatprep.subr.mxu0 0.0
    %724 = vmatpush1.xpose.msra.mxu0 0.0
    %725 = vmatprep.subr.mxu0 0.0
    %726 = vmatpush1.xpose.msra.mxu0 0.0
    %727 = vmatprep.subr.mxu0 0.0
    %728 = vmatpush1.xpose.msra.mxu0 0.0
    %729 = vmatprep.subr.mxu0 0.0
    %730 = vmatpush1.xpose.msra.mxu0 0.0
    %731 = vmatprep.subr.mxu0 0.0
    %732 = vmatpush1.xpose.msra.mxu0 0.0
    %733 = vmatprep.subr.mxu0 0.0
    %734 = vmatpush1.xpose.msra.mxu0 0.0
    %735 = vmatprep.subr.mxu0 0.0
    %736 = vmatpush1.xpose.msra.mxu0 0.0
    %737 = vmatprep.subr.mxu0 0.0
    %738 = vmatpush1.xpose.msra.mxu0 0.0
    %739 = vmatprep.subr.mxu0 0.0
    %740 = vmatpush1.xpose.msra.mxu0 0.0
    %741 = vmatprep.subr.mxu0 0.0
    %742 = vmatpush1.xpose.msra.mxu0 0.0
    %743 = vmatprep.subr.mxu0 0.0
    %744 = vmatpush1.xpose.msra.mxu0 0.0
    %745 = vmatprep.subr.mxu0 0.0
    %746 = vmatpush1.xpose.msra.mxu0 0.0
    %747 = vmatprep.subr.mxu0 0.0
    %748 = vmatpush1.xpose.msra.mxu0 0.0
    %749 = vmatprep.subr.mxu0 0.0
    %750 = vmatpush1.xpose.msra.mxu0 0.0
    %751 = vmatprep.subr.mxu0 0.0
    %752 = vmatpush1.xpose.msra.mxu0 0.0
    %753 = vmatprep.subr.mxu0 0.0
    %754 = vmatpush1.xpose.msra.mxu0 0.0
    %755 = vmatprep.subr.mxu0 0.0
    %756 = vmatpush1.xpose.msra.mxu0 0.0
    %757 = vmatprep.subr.mxu0 0.0
    %758 = vmatpush1.xpose.msra.mxu0 0.0
    %759 = vmatprep.subr.mxu0 0.0
    %760 = vmatpush1.xpose.msra.mxu0 0.0
    %761 = vmatprep.subr.mxu0 0.0
    %762 = vmatpush1.xpose.msra.mxu0 0.0
    %763 = vmatprep.subr.mxu0 0.0
    %764 = vmatpush1.xpose.msra.mxu0 0.0
    %765 = vmatprep.subr.mxu0 0.0
    %766 = vmatpush1.xpose.msra.mxu0 0.0
    %767 = vmatprep.subr.mxu0 0.0
    %768 = vmatpush1.xpose.msra.mxu0 0.0
    %769 = vmatprep.subr.mxu0 0.0
    %770 = vmatpush1.xpose.msra.mxu0 0.0
    %771 = vmatprep.mubr.f32.mxu0 0.0
    %772 = vmatmul.mubr.f32.gmra.mrb[0].mxu0 %v702
    %v773 = vpop.f32.mrb[0].mxu0
    %v774 = vadd.f32 0.0, %v773
    %v775 = vpop.f32.mrb[0].mxu0
    %776 = vdwg.mxu0
    %vm777 = vcmask 64512
    %778 = vst.msk [vmem:[#allocation7] sm:$0xff] %vm777, %v242
    %779 = vst.msk [vmem:[#allocation7 + $0x8] sm:$0xff] %vm777, %v318
    %780 = vst.msk [vmem:[#allocation7 + $0x10] sm:$0xff] %vm777, %v394
    %781 = vst.msk [vmem:[#allocation7 + $0x18] sm:$0xff] %vm777, %v470
    %782 = vst.msk [vmem:[#allocation7 + $0x20] sm:$0xff] %vm777, %v546
    %783 = vst.msk [vmem:[#allocation7 + $0x28] sm:$0xff] %vm777, %v622
    %784 = vst.msk [vmem:[#allocation7 + $0x30] sm:$0xff] %vm777, %v698
    %785 = vst.msk [vmem:[#allocation7 + $0x38] sm:$0xff] %vm777, %v774
    // Predicated region
    $region18: #{tpu_custom_call.1} parent=1 // pred_check
      _
    $region19: #{tpu_custom_call.1} parent=1 // pred_check_branch
      %787 = sbr.rel (0) target = $region21
    $region20: #{tpu_custom_call.1} parent=1 // pred_region
      %s789 = ssub.s32 1024, 1024
      %790 = vsyncadd [#allocation4], %s789
      %s791 = sshll.u32 [#allocation7], 4
      %s792 = int_to_ptr.vmem [resolvable:$true] %s791
      %797 = dma.vmem_to_hbm [thread:$0]  %s792, 1024, %s2, [#allocation4], 128, 128, 8
    $region21: #{tpu_custom_call.1} parent=1 // pred_fallthru
      _
    // Predicated region
    $region22: #{tpu_custom_call.1} parent=1 // pred_check
      _
    $region23: #{tpu_custom_call.1} parent=1 // pred_check_branch
      %799 = sbr.rel (0) target = $region25
    $region24: #{tpu_custom_call.1} parent=1 // pred_region
      %800 = dma.done [#allocation4], 1024
    $region25: #{tpu_custom_call.1} parent=1 // pred_fallthru
      _
    %801 = vsyncpa [#allocation3], 1
    %802 = vsyncpa [#allocation6], 1
    %803 = vsyncpa [#allocation4], 1

</llo_original>
